<compile_context>
chip_gen: v7x
topology: tpu7x:2x2x1
jax: 0.10.0
libtpu: 0.0.40
codegen_flags: <defaults>
</compile_context>

<pallas_src>
import jax
import jax.numpy as jnp
from jax.experimental import pallas as pl
from jax.experimental.pallas import tpu as pltpu

# Batch-tile candidates (multiples of 128 so the lane-dense (1, tile_b) output
# block always satisfies the (8, 128) block-shape rule).
_TILE_CANDIDATES = (128, 256, 512, 1024, 2048, 4096)
_VMEM_LIMIT_BYTES = 32 * 1024 * 1024  # explicit; >= scoped default on all gens


def _round_up(n, m):
    return ((n + m - 1) // m) * m


def _choose_tile_b(batch):
    """Largest candidate tile whose zero-padding waste stays ~<=12.5% of B."""
    best = _TILE_CANDIDATES[0]
    allowance = max(batch // 8, _TILE_CANDIDATES[0] - 1)
    for t in _TILE_CANDIDATES:
        if _round_up(batch, t) - batch <= allowance:
            best = t
    return best


def _dimension_semantics(num_tiles):
    """CORE_PARALLEL on v7x (actually engages both TensorCores); else arbitrary."""
    kind = jax.devices()[0].device_kind.lower()
    if num_tiles >= 2 and ("v7" in kind or "7x" in kind):
        return (getattr(pltpu, "CORE_PARALLEL", "parallel"),)
    return ("arbitrary",)


def qsar_mlp_kernel(x_ref, w1_ref, b1_ref, w2_ref, b2_ref, w3_ref, b3_ref, o_ref):
    # fc1 + relu: bf16 operands on the MXU, f32 accumulation / activations.
    x = x_ref[...].astype(jnp.bfloat16)
    h1 = jnp.dot(x, w1_ref[...], preferred_element_type=jnp.float32)
    h1 = jnp.maximum(h1 + b1_ref[...], 0.0)
    # fc2 + relu
    h2 = jnp.dot(h1.astype(jnp.bfloat16), w2_ref[...],
                 preferred_element_type=jnp.float32)
    h2 = jnp.maximum(h2 + b2_ref[...], 0.0)
    # out layer (64 -> 1): VPU multiply + lane reduce (no wasted N=1 MXU pass).
    col = jnp.sum(h2 * w3_ref[...], axis=-1, keepdims=True)        # (tile_b, 1)
    # Column -> lane-dense row via one small XLU transpose (XLU has slack);
    # bias + sigmoid then run on the dense row, and the store is full-width
    # instead of tile_b/8 one-lane masked stores.
    row = jnp.transpose(col)                                        # (1, tile_b)
    o_ref[...] = jax.nn.sigmoid(row + b3_ref[...])


@jax.jit
def qsar_model_forward(x, params):
    """sigmoid(relu(relu(x@W1+b1)@W2+b2) . w3 + b3) -> shape (B,), fused."""
    w1, b1, w2, b2, w3, b3 = params
    B, D = x.shape

    # Padding-aware batch tiling: biggest 128-aligned tile with bounded waste.
    tile_b = _choose_tile_b(B)
    b_pad = _round_up(B, tile_b)
    num_tiles = b_pad // tile_b
    if b_pad != B:
        x = jnp.pad(x, ((0, b_pad - B), (0, 0)))

    # Matmul operands in bf16 (native MXU rate); biases and the final 64->1
    # projection stay f32 (v5e VPU/EUP have no bf16).
    w1b = w1.astype(jnp.bfloat16)
    w2b = w2.astype(jnp.bfloat16)

    # Constant index_map -> weights/biases stay VMEM-resident across the grid;
    # only x tiles and the (1, tile_b) output rows stream.
    resident = lambda a: pl.BlockSpec(a.shape, lambda i, _n=a.ndim: (0,) * _n)

    out = pl.pallas_call(
        qsar_mlp_kernel,
        # Lane-dense output: a single (1, b_pad) row, written tile_b lanes at a
        # time (second-minor block dim 1 == full array dim; last dim is a
        # multiple of 128).
        out_shape=jax.ShapeDtypeStruct((1, b_pad), jnp.float32),
        grid=(num_tiles,),
        in_specs=[
            pl.BlockSpec((tile_b, D), lambda i: (i, 0)),
            resident(w1b), resident(b1),
            resident(w2b), resident(b2),
            resident(w3), resident(b3),
        ],
        out_specs=pl.BlockSpec((1, tile_b), lambda i: (0, i)),
        compiler_params=pltpu.CompilerParams(
            dimension_semantics=_dimension_semantics(num_tiles),
            vmem_limit_bytes=_VMEM_LIMIT_BYTES,
        ),
    )(x, w1b, b1, w2b, b2, w3, b3)

    # torch.sigmoid(...).squeeze(): strip padding, return shape (B,).
    return out[0, :B]


def init_params(key, input_dim):
    """Deterministic init mimicking nn.Linear default (uniform +/- 1/sqrt(fan_in))."""
    def linear(k, fan_in, fan_out):
        kw, kb = jax.random.split(k)
        bound = 1.0 / (fan_in ** 0.5)
        w = jax.random.uniform(kw, (fan_in, fan_out), jnp.float32, -bound, bound)
        b = jax.random.uniform(kb, (1, fan_out), jnp.float32, -bound, bound)
        return w, b

    k1, k2, k3 = jax.random.split(key, 3)
    w1, b1 = linear(k1, input_dim, 128)
    w2, b2 = linear(k2, 128, 64)
    w3, b3 = linear(k3, 64, 1)
    # Store w3 as a (1, 64) row vector for the in-kernel VPU reduce.
    return (w1, b1, w2, b2, w3.T, b3)


def reference_forward(x, params):
    w1, b1, w2, b2, w3, b3 = params
    h = jnp.maximum(x @ w1 + b1, 0.0)
    h = jnp.maximum(h @ w2 + b2, 0.0)
    return jax.nn.sigmoid(h @ w3.T + b3)[:, 0]


if __name__ == "__main__":
    key = jax.random.PRNGKey(0)
    kx, kp, kx2 = jax.random.split(key, 3)

    input_dim = 32
    params = init_params(kp, input_dim)

    # Small harness batch (single 128-row tile after padding).
    batch = 8
    x = jax.random.normal(kx, (batch, input_dim), jnp.float32)
    y = qsar_model_forward(x, params)
    jax.block_until_ready(y)
    ref = reference_forward(x, params)
    assert y.shape == (batch,)
    assert jnp.max(jnp.abs(y - ref)) < 2e-2  # bf16 matmul operands

    # Ragged batch (exercises the zero-padding tail path).
    x2 = jax.random.normal(kx2, (37, input_dim), jnp.float32)
    y2 = qsar_model_forward(x2, params)
    jax.block_until_ready(y2)
    ref2 = reference_forward(x2, params)
    assert y2.shape == (37,)
    assert jnp.max(jnp.abs(y2 - ref2)) < 2e-2

    print("KERNEL_OK")
</pallas_src>

<mosaic_0001>
module attributes {stable_mosaic.version = 11 : i64} {
  func.func @qsar_mlp_kernel(%arg0: i32, %arg1: memref<128x32xf32, #tpu.memory_space<vmem>>, %arg2: memref<32x128xbf16, #tpu.memory_space<vmem>>, %arg3: memref<1x128xf32, #tpu.memory_space<vmem>>, %arg4: memref<128x64xbf16, #tpu.memory_space<vmem>>, %arg5: memref<1x64xf32, #tpu.memory_space<vmem>>, %arg6: memref<1x64xf32, #tpu.memory_space<vmem>>, %arg7: memref<1x1xf32, #tpu.memory_space<vmem>>, %arg8: memref<1x128xf32, #tpu.memory_space<vmem>>) attributes {dimension_semantics = [#tpu.dimension_semantics<arbitrary>], iteration_bounds = array<i64: 1>, scalar_prefetch = 0 : i64, scratch_operands = 0 : i64, tpu.core_type = #tpu.core_type<tc>, window_params = [{transform_indices = @transform_0, window_bounds = array<i64: 128, 32>}, {pipeline_mode = #tpu.pipeline_mode<synchronous>, transform_indices = @transform_1, window_bounds = array<i64: 32, 128>}, {pipeline_mode = #tpu.pipeline_mode<synchronous>, transform_indices = @transform_2, window_bounds = array<i64: 1, 128>}, {pipeline_mode = #tpu.pipeline_mode<synchronous>, transform_indices = @transform_3, window_bounds = array<i64: 128, 64>}, {pipeline_mode = #tpu.pipeline_mode<synchronous>, transform_indices = @transform_4, window_bounds = array<i64: 1, 64>}, {pipeline_mode = #tpu.pipeline_mode<synchronous>, transform_indices = @transform_5, window_bounds = array<i64: 1, 64>}, {pipeline_mode = #tpu.pipeline_mode<synchronous>, transform_indices = @transform_6, window_bounds = array<i64: 1, 1>}, {transform_indices = @transform_7, window_bounds = array<i64: 1, 128>}]} {
    %c0 = arith.constant 0 : index
    %c0_0 = arith.constant 0 : index
    %0 = vector.load %arg1[%c0, %c0_0] : memref<128x32xf32, #tpu.memory_space<vmem>>, vector<128x32xf32>
    %1 = arith.truncf %0 : vector<128x32xf32> to vector<128x32xbf16>
    %c0_1 = arith.constant 0 : index
    %c0_2 = arith.constant 0 : index
    %2 = vector.load %arg2[%c0_1, %c0_2] : memref<32x128xbf16, #tpu.memory_space<vmem>>, vector<32x128xbf16>
    %cst = arith.constant dense<0.000000e+00> : vector<128x128xf32>
    %3 = tpu.matmul %1, %2, %cst {dimension_numbers = #tpu.dot_dimension_numbers<[1], [0], [0], [1], [0, 0, 1, 1], [], []>} : vector<128x32xbf16>, vector<32x128xbf16>, vector<128x128xf32> -> vector<128x128xf32>
    %c0_3 = arith.constant 0 : index
    %c0_4 = arith.constant 0 : index
    %4 = vector.load %arg3[%c0_3, %c0_4] : memref<1x128xf32, #tpu.memory_space<vmem>>, vector<1x128xf32>
    %5 = vector.broadcast %4 : vector<1x128xf32> to vector<128x128xf32>
    %6 = arith.addf %3, %5 : vector<128x128xf32>
    %cst_5 = arith.constant 0.000000e+00 : f32
    %7 = vector.broadcast %cst_5 : f32 to vector<128x128xf32>
    %8 = arith.maximumf %6, %7 : vector<128x128xf32>
    %9 = arith.truncf %8 : vector<128x128xf32> to vector<128x128xbf16>
    %c0_6 = arith.constant 0 : index
    %c0_7 = arith.constant 0 : index
    %10 = vector.load %arg4[%c0_6, %c0_7] : memref<128x64xbf16, #tpu.memory_space<vmem>>, vector<128x64xbf16>
    %cst_8 = arith.constant dense<0.000000e+00> : vector<128x64xf32>
    %11 = tpu.matmul %9, %10, %cst_8 {dimension_numbers = #tpu.dot_dimension_numbers<[1], [0], [0], [1], [0, 0, 1, 1], [], []>} : vector<128x128xbf16>, vector<128x64xbf16>, vector<128x64xf32> -> vector<128x64xf32>
    %c0_9 = arith.constant 0 : index
    %c0_10 = arith.constant 0 : index
    %12 = vector.load %arg5[%c0_9, %c0_10] : memref<1x64xf32, #tpu.memory_space<vmem>>, vector<1x64xf32>
    %13 = vector.broadcast %12 : vector<1x64xf32> to vector<128x64xf32>
    %14 = arith.addf %11, %13 : vector<128x64xf32>
    %cst_11 = arith.constant 0.000000e+00 : f32
    %15 = vector.broadcast %cst_11 : f32 to vector<128x64xf32>
    %16 = arith.maximumf %14, %15 : vector<128x64xf32>
    %c0_12 = arith.constant 0 : index
    %c0_13 = arith.constant 0 : index
    %17 = vector.load %arg6[%c0_12, %c0_13] : memref<1x64xf32, #tpu.memory_space<vmem>>, vector<1x64xf32>
    %18 = vector.broadcast %17 : vector<1x64xf32> to vector<128x64xf32>
    %19 = arith.mulf %16, %18 : vector<128x64xf32>
    %cst_14 = arith.constant dense<0.000000e+00> : vector<128xf32>
    %20 = vector.multi_reduction <add>, %19, %cst_14 [1] : vector<128x64xf32> to vector<128xf32>
    %21 = vector.shape_cast %20 : vector<128xf32> to vector<128x1xf32>
    %22 = tpu.transpose %21, [1, 0] : vector<128x1xf32> -> vector<1x128xf32>
    %c0_15 = arith.constant 0 : index
    %c0_16 = arith.constant 0 : index
    %23 = vector.load %arg7[%c0_15, %c0_16] : memref<1x1xf32, #tpu.memory_space<vmem>>, vector<1x1xf32>
    %24 = vector.broadcast %23 : vector<1x1xf32> to vector<1x128xf32>
    %25 = arith.addf %22, %24 : vector<1x128xf32>
    %26 = arith.negf %25 : vector<1x128xf32>
    %27 = math.exp %26 : vector<1x128xf32>
    %cst_17 = arith.constant 1.000000e+00 : f32
    %28 = vector.broadcast %cst_17 : f32 to vector<1x128xf32>
    %29 = arith.addf %28, %27 : vector<1x128xf32>
    %30 = arith.divf %28, %29 : vector<1x128xf32>
    %c0_18 = arith.constant 0 : index
    %c0_19 = arith.constant 0 : index
    %31 = vector.load %arg8[%c0_18, %c0_19] : memref<1x128xf32, #tpu.memory_space<vmem>>, vector<1x128xf32>
    tpu.vector_store %arg8[%c0_18, %c0_19], %30 {strides = array<i32>} : memref<1x128xf32, #tpu.memory_space<vmem>>, vector<1x128xf32>,
    return
  }
  func.func @transform_0(%arg0: i32) -> (i32, i32) {
    %c0_i32 = arith.constant 0 : i32
    %c0_i32_0 = arith.constant 0 : i32
    return %arg0, %c0_i32 : i32, i32
  }
  func.func @transform_1(%arg0: i32) -> (i32, i32) {
    %c0_i32 = arith.constant 0 : i32
    %c0_i32_0 = arith.constant 0 : i32
    %c0_i32_1 = arith.constant 0 : i32
    return %c0_i32, %c0_i32_0 : i32, i32
  }
  func.func @transform_2(%arg0: i32) -> (i32, i32) {
    %c0_i32 = arith.constant 0 : i32
    %c0_i32_0 = arith.constant 0 : i32
    %c0_i32_1 = arith.constant 0 : i32
    return %c0_i32, %c0_i32_0 : i32, i32
  }
  func.func @transform_3(%arg0: i32) -> (i32, i32) {
    %c0_i32 = arith.constant 0 : i32
    %c0_i32_0 = arith.constant 0 : i32
    %c0_i32_1 = arith.constant 0 : i32
    return %c0_i32, %c0_i32_0 : i32, i32
  }
  func.func @transform_4(%arg0: i32) -> (i32, i32) {
    %c0_i32 = arith.constant 0 : i32
    %c0_i32_0 = arith.constant 0 : i32
    %c0_i32_1 = arith.constant 0 : i32
    return %c0_i32, %c0_i32_0 : i32, i32
  }
  func.func @transform_5(%arg0: i32) -> (i32, i32) {
    %c0_i32 = arith.constant 0 : i32
    %c0_i32_0 = arith.constant 0 : i32
    %c0_i32_1 = arith.constant 0 : i32
    return %c0_i32, %c0_i32_0 : i32, i32
  }
  func.func @transform_6(%arg0: i32) -> (i32, i32) {
    %c0_i32 = arith.constant 0 : i32
    %c0_i32_0 = arith.constant 0 : i32
    %c0_i32_1 = arith.constant 0 : i32
    return %c0_i32, %c0_i32_0 : i32, i32
  }
  func.func @transform_7(%arg0: i32) -> (i32, i32) {
    %c0_i32 = arith.constant 0 : i32
    %c0_i32_0 = arith.constant 0 : i32
    return %c0_i32, %arg0 : i32, i32
  }
}

</mosaic_0001>

<llo_original>
// kernel: qsar_model_forward.1
$region0: #{qsar_model_forward.1}
  #allocation0 [shape = 'u32[]', space=smem, size = 0x4, offset = 0x4, fixed_abs, tag = 'smem constant byte address 0x4 - core index']
  #allocation1 [shape = 'u32[144,128]{1,0:T(1,128)}', space=vmem, size = 0x12000, scoped, tag = 'internal scratch']
  #allocation2 [shape = 'f32[1,1]{1,0:T(1,128)S(1)}', space=vmem, size = 0x200, scoped, tag = 'scoped memory for qsar_model_forward.1']
  %s0 = inlined_call_operand.vmem [shape: f32[128,32], index: 0, kind: input, shape index: {}]
  %s1 = inlined_call_operand.vmem [shape: bf16[32,128], index: 1, kind: input, shape index: {}]
  %s2 = inlined_call_operand.vmem [shape: f32[1,128], index: 2, kind: input, shape index: {}]
  %s3 = inlined_call_operand.vmem [shape: bf16[128,64], index: 3, kind: input, shape index: {}]
  %s4 = inlined_call_operand.vmem [shape: f32[1,64], index: 4, kind: input, shape index: {}]
  %s5 = inlined_call_operand.vmem [shape: f32[1,64], index: 5, kind: input, shape index: {}]
  %s6 = inlined_call_operand.<no memory space> [shape: f32[1,1], index: 6, kind: input, shape index: {}]
  %s7 = inlined_call_operand.vmem [shape: f32[1,128], index: 7, kind: output, shape index: {}]
  %s8 = sld [smem:[#allocation0]]
  $region38: #{qsar_model_forward.1} parent=0
    _
  %s10 = ssub.s32 1, %s8
  %s11 = scalar_select 0, %s10, %s8
  %v12 = vstv %s6
  %13 = vst [vmem:[#allocation2] sm:$0x1] %v12
  // Predicated region
  $region2: #{qsar_model_forward.1} parent=0 // pred_check
    _
  $region3: #{qsar_model_forward.1} parent=0 // pred_check_branch
    %15 = sbr.rel (0) target = $region5
  $region4: #{qsar_model_forward.1} parent=0 // pred_region
    _
  $region5: #{qsar_model_forward.1} parent=0 // pred_fallthru
    _
  // Predicated region
  $region6: #{qsar_model_forward.1} parent=0 // pred_check
    _
  $region7: #{qsar_model_forward.1} parent=0 // pred_check_branch
    %17 = sbr.rel (0) target = $region9
  $region8: #{qsar_model_forward.1} parent=0 // pred_region
    _
  $region9: #{qsar_model_forward.1} parent=0 // pred_fallthru
    _
  // Predicated region
  $region10: #{qsar_model_forward.1} parent=0 // pred_check
    _
  $region11: #{qsar_model_forward.1} parent=0 // pred_check_branch
    %19 = sbr.rel (0) target = $region13
  $region12: #{qsar_model_forward.1} parent=0 // pred_region
    _
  $region13: #{qsar_model_forward.1} parent=0 // pred_fallthru
    _
  // Predicated region
  $region14: #{qsar_model_forward.1} parent=0 // pred_check
    _
  $region15: #{qsar_model_forward.1} parent=0 // pred_check_branch
    %21 = sbr.rel (0) target = $region17
  $region16: #{qsar_model_forward.1} parent=0 // pred_region
    _
  $region17: #{qsar_model_forward.1} parent=0 // pred_fallthru
    _
  // Predicated region
  $region18: #{qsar_model_forward.1} parent=0 // pred_check
    _
  $region19: #{qsar_model_forward.1} parent=0 // pred_check_branch
    %23 = sbr.rel (0) target = $region21
  $region20: #{qsar_model_forward.1} parent=0 // pred_region
    _
  $region21: #{qsar_model_forward.1} parent=0 // pred_fallthru
    _
  // Predicated region
  $region22: #{qsar_model_forward.1} parent=0 // pred_check
    _
  $region23: #{qsar_model_forward.1} parent=0 // pred_check_branch
    %25 = sbr.rel (0) target = $region25
  $region24: #{qsar_model_forward.1} parent=0 // pred_region
    _
  $region25: #{qsar_model_forward.1} parent=0 // pred_fallthru
    _
  // Predicated region
  $region26: #{qsar_model_forward.1} parent=0 // pred_check
    _
  $region27: #{qsar_model_forward.1} parent=0 // pred_check_branch
    %27 = sbr.rel (0) target = $region29
  $region28: #{qsar_model_forward.1} parent=0 // pred_region
    _
  $region29: #{qsar_model_forward.1} parent=0 // pred_fallthru
    _
  %v29 = vld [vmem:[%s0] sm:$0xff]
  %v30 = vld [vmem:[%s0 + $0x8] sm:$0xff]
  %v31 = vld [vmem:[%s0 + $0x10] sm:$0xff]
  %v32 = vld [vmem:[%s0 + $0x18] sm:$0xff]
  %v33 = vld [vmem:[%s0 + $0x20] sm:$0xff]
  %v34 = vld [vmem:[%s0 + $0x28] sm:$0xff]
  %v35 = vld [vmem:[%s0 + $0x30] sm:$0xff]
  %v36 = vld [vmem:[%s0 + $0x38] sm:$0xff]
  %v37 = vld [vmem:[%s0 + $0x40] sm:$0xff]
  %v38 = vld [vmem:[%s0 + $0x48] sm:$0xff]
  %v39 = vld [vmem:[%s0 + $0x50] sm:$0xff]
  %v40 = vld [vmem:[%s0 + $0x58] sm:$0xff]
  %v41 = vld [vmem:[%s0 + $0x60] sm:$0xff]
  %v42 = vld [vmem:[%s0 + $0x68] sm:$0xff]
  %v43 = vld [vmem:[%s0 + $0x70] sm:$0xff]
  %v44 = vld [vmem:[%s0 + $0x78] sm:$0xff]
  %v45 = vpack.c.bf16 %v30, %v29
  %v46 = vpack.c.bf16 %v32, %v31
  %v47 = vpack.c.bf16 %v34, %v33
  %v48 = vpack.c.bf16 %v36, %v35
  %v49 = vpack.c.bf16 %v38, %v37
  %v50 = vpack.c.bf16 %v40, %v39
  %v51 = vpack.c.bf16 %v42, %v41
  %v52 = vpack.c.bf16 %v44, %v43
  %v53 = vld [vmem:[%s1] sm:$0xf]
  %v54 = vld [vmem:[%s1 + $0x4] sm:$0xf]
  %v55 = vld [vmem:[%s1 + $0x8] sm:$0xf]
  %v56 = vld [vmem:[%s1 + $0xc] sm:$0xf]
  %v57 = vld [vmem:[%s2] sm:$0x1]
  %v59 = vlaneseq
  %v60 = vshrl.u32 %v59, 7
  %v61 = vsub.s32 0, %v60
  %v62 = vrot.slane %v57, %v61
  %v68 = vunpack.c.l.b16 %v53
  %v69 = vunpack.c.l.b16 %v54
  %v70 = vunpack.c.l.b16 %v55
  %v71 = vunpack.c.l.b16 %v56
  %v72 = vpack.c.b16 %v69, %v68
  %v73 = vpack.c.b16 %v71, %v70
  %vm76 = vcmask 261120
  %v78 = vsel %vm76, %v45, 0
  %v81 = vsel %vm76, %v46, 0
  %v84 = vsel %vm76, %v47, 0
  %v87 = vsel %vm76, %v48, 0
  %v90 = vsel %vm76, %v49, 0
  %v93 = vsel %vm76, %v50, 0
  %v96 = vsel %vm76, %v51, 0
  %v99 = vsel %vm76, %v52, 0
  %101 = vmatprep.subr.bf16.mxu0 0
  %102 = vmatpush1.bf16.msra.mxu0 %v72
  %103 = vmatprep.subr.bf16.mxu0 0
  %104 = vmatpush1.bf16.msra.mxu0 %v73
  %105 = vmatprep.subr.bf16.mxu0 0
  %106 = vmatpush1.bf16.msra.mxu0 0
  %107 = vmatprep.subr.bf16.mxu0 0
  %108 = vmatpush1.bf16.msra.mxu0 0
  %109 = vmatprep.subr.bf16.mxu0 0
  %110 = vmatpush1.bf16.msra.mxu0 0
  %111 = vmatprep.subr.bf16.mxu0 0
  %112 = vmatpush1.bf16.msra.mxu0 0
  %113 = vmatprep.subr.bf16.mxu0 0
  %114 = vmatpush1.bf16.msra.mxu0 0
  %115 = vmatprep.subr.bf16.mxu0 0
  %116 = vmatpush1.bf16.msra.mxu0 0
  %117 = vmatprep.subr.bf16.mxu0 0
  %118 = vmatpush1.bf16.msra.mxu0 0
  %119 = vmatprep.subr.bf16.mxu0 0
  %120 = vmatpush1.bf16.msra.mxu0 0
  %121 = vmatprep.subr.bf16.mxu0 0
  %122 = vmatpush1.bf16.msra.mxu0 0
  %123 = vmatprep.subr.bf16.mxu0 0
  %124 = vmatpush1.bf16.msra.mxu0 0
  %125 = vmatprep.subr.bf16.mxu0 0
  %126 = vmatpush1.bf16.msra.mxu0 0
  %127 = vmatprep.subr.bf16.mxu0 0
  %128 = vmatpush1.bf16.msra.mxu0 0
  %129 = vmatprep.subr.bf16.mxu0 0
  %130 = vmatpush1.bf16.msra.mxu0 0
  %131 = vmatprep.subr.bf16.mxu0 0
  %132 = vmatpush1.bf16.msra.mxu0 0
  %133 = vmatprep.mubr.bf16.mxu0 0
  %134 = vmatmul.mubr.bf16.gmra.mrb[0].mxu0 %v78
  %v135 = vpop.f32.mrb[0].mxu0
  %v136 = vadd.f32 %v62, %v135
  %v137 = vpop.f32.mrb[0].mxu0
  %v138 = vpop.f32.mrb[0].mxu0
  %v139 = vadd.f32 %v62, %v138
  %v140 = vpop.f32.mrb[0].mxu0
  %141 = vmatprep.mubr.bf16.mxu0 0
  %142 = vmatmul.mubr.bf16.gmra.mrb[0].mxu0 %v81
  %v143 = vpop.f32.mrb[0].mxu0
  %v144 = vadd.f32 %v62, %v143
  %v145 = vpop.f32.mrb[0].mxu0
  %v146 = vpop.f32.mrb[0].mxu0
  %v147 = vadd.f32 %v62, %v146
  %v148 = vpop.f32.mrb[0].mxu0
  %149 = vmatprep.mubr.bf16.mxu0 0
  %150 = vmatmul.mubr.bf16.gmra.mrb[0].mxu0 %v84
  %v151 = vpop.f32.mrb[0].mxu0
  %v152 = vadd.f32 %v62, %v151
  %v153 = vpop.f32.mrb[0].mxu0
  %v154 = vpop.f32.mrb[0].mxu0
  %v155 = vadd.f32 %v62, %v154
  %v156 = vpop.f32.mrb[0].mxu0
  %157 = vmatprep.mubr.bf16.mxu0 0
  %158 = vmatmul.mubr.bf16.gmra.mrb[0].mxu0 %v87
  %v159 = vpop.f32.mrb[0].mxu0
  %v160 = vadd.f32 %v62, %v159
  %v161 = vpop.f32.mrb[0].mxu0
  %v162 = vpop.f32.mrb[0].mxu0
  %v163 = vadd.f32 %v62, %v162
  %v164 = vpop.f32.mrb[0].mxu0
  %165 = vmatprep.mubr.bf16.mxu0 0
  %166 = vmatmul.mubr.bf16.gmra.mrb[0].mxu0 %v90
  %v167 = vpop.f32.mrb[0].mxu0
  %v168 = vadd.f32 %v62, %v167
  %v169 = vpop.f32.mrb[0].mxu0
  %v170 = vpop.f32.mrb[0].mxu0
  %v171 = vadd.f32 %v62, %v170
  %v172 = vpop.f32.mrb[0].mxu0
  %173 = vmatprep.mubr.bf16.mxu0 0
  %174 = vmatmul.mubr.bf16.gmra.mrb[0].mxu0 %v93
  %v175 = vpop.f32.mrb[0].mxu0
  %v176 = vadd.f32 %v62, %v175
  %v177 = vpop.f32.mrb[0].mxu0
  %v178 = vpop.f32.mrb[0].mxu0
  %v179 = vadd.f32 %v62, %v178
  %v180 = vpop.f32.mrb[0].mxu0
  %181 = vmatprep.mubr.bf16.mxu0 0
  %182 = vmatmul.mubr.bf16.gmra.mrb[0].mxu0 %v96
  %v183 = vpop.f32.mrb[0].mxu0
  %v184 = vadd.f32 %v62, %v183
  %v185 = vpop.f32.mrb[0].mxu0
  %v186 = vpop.f32.mrb[0].mxu0
  %v187 = vadd.f32 %v62, %v186
  %v188 = vpop.f32.mrb[0].mxu0
  %189 = vmatprep.mubr.bf16.mxu0 0
  %190 = vmatmul.mubr.bf16.gmra.mrb[0].mxu0 %v99
  %v191 = vpop.f32.mrb[0].mxu0
  %v192 = vadd.f32 %v62, %v191
  %v193 = vpop.f32.mrb[0].mxu0
  %v194 = vpop.f32.mrb[0].mxu0
  %v195 = vadd.f32 %v62, %v194
  %v196 = vpop.f32.mrb[0].mxu0
  %197 = vdwg.mxu0
  %v198 = vmax.f32 %v136, 0.0
  %v199 = vmax.f32 %v139, 0.0
  %v200 = vmax.f32 %v144, 0.0
  %v201 = vmax.f32 %v147, 0.0
  %v202 = vmax.f32 %v152, 0.0
  %v203 = vmax.f32 %v155, 0.0
  %v204 = vmax.f32 %v160, 0.0
  %v205 = vmax.f32 %v163, 0.0
  %v206 = vmax.f32 %v168, 0.0
  %v207 = vmax.f32 %v171, 0.0
  %v208 = vmax.f32 %v176, 0.0
  %v209 = vmax.f32 %v179, 0.0
  %v210 = vmax.f32 %v184, 0.0
  %v211 = vmax.f32 %v187, 0.0
  %v212 = vmax.f32 %v192, 0.0
  %v213 = vmax.f32 %v195, 0.0
  %v214 = vpack.c.bf16 %v199, %v198
  %v215 = vpack.c.bf16 %v201, %v200
  %v216 = vpack.c.bf16 %v203, %v202
  %v217 = vpack.c.bf16 %v205, %v204
  %v218 = vpack.c.bf16 %v207, %v206
  %v219 = vpack.c.bf16 %v209, %v208
  %v220 = vpack.c.bf16 %v211, %v210
  %v221 = vpack.c.bf16 %v213, %v212
  %v222 = vld [vmem:[%s3] sm:$0xf]
  %v223 = vld [vmem:[%s3 + $0x4] sm:$0xf]
  %v224 = vld [vmem:[%s3 + $0x8] sm:$0xf]
  %v225 = vld [vmem:[%s3 + $0xc] sm:$0xf]
  %v226 = vld [vmem:[%s3 + $0x10] sm:$0xf]
  %v227 = vld [vmem:[%s3 + $0x14] sm:$0xf]
  %v228 = vld [vmem:[%s3 + $0x18] sm:$0xf]
  %v229 = vld [vmem:[%s3 + $0x1c] sm:$0xf]
  %v230 = vld [vmem:[%s3 + $0x20] sm:$0xf]
  %v231 = vld [vmem:[%s3 + $0x24] sm:$0xf]
  %v232 = vld [vmem:[%s3 + $0x28] sm:$0xf]
  %v233 = vld [vmem:[%s3 + $0x2c] sm:$0xf]
  %v234 = vld [vmem:[%s3 + $0x30] sm:$0xf]
  %v235 = vld [vmem:[%s3 + $0x34] sm:$0xf]
  %v236 = vld [vmem:[%s3 + $0x38] sm:$0xf]
  %v237 = vld [vmem:[%s3 + $0x3c] sm:$0xf]
  %v238 = vld [vmem:[%s4] sm:$0x1]
  %v240 = vlaneseq
  %v241 = vshrl.u32 %v240, 7
  %v242 = vsub.s32 0, %v241
  %v243 = vrot.slane %v238, %v242
  %v261 = vunpack.c.l.b16 %v222
  %v262 = vunpack.c.l.b16 %v223
  %v263 = vunpack.c.l.b16 %v224
  %v264 = vunpack.c.l.b16 %v225
  %v265 = vunpack.c.l.b16 %v226
  %v266 = vunpack.c.l.b16 %v227
  %v267 = vunpack.c.l.b16 %v228
  %v268 = vunpack.c.l.b16 %v229
  %v269 = vunpack.c.l.b16 %v230
  %v270 = vunpack.c.l.b16 %v231
  %v271 = vunpack.c.l.b16 %v232
  %v272 = vunpack.c.l.b16 %v233
  %v273 = vunpack.c.l.b16 %v234
  %v274 = vunpack.c.l.b16 %v235
  %v275 = vunpack.c.l.b16 %v236
  %v276 = vunpack.c.l.b16 %v237
  %v277 = vpack.c.b16 %v262, %v261
  %v278 = vpack.c.b16 %v264, %v263
  %v279 = vpack.c.b16 %v266, %v265
  %v280 = vpack.c.b16 %v268, %v267
  %v281 = vpack.c.b16 %v270, %v269
  %v282 = vpack.c.b16 %v272, %v271
  %v283 = vpack.c.b16 %v274, %v273
  %v284 = vpack.c.b16 %v276, %v275
  %293 = vmatprep.subr.bf16.mxu0 0
  %294 = vmatpush1.bf16.msra.mxu0 %v277
  %295 = vmatprep.subr.bf16.mxu0 0
  %296 = vmatpush1.bf16.msra.mxu0 %v278
  %297 = vmatprep.subr.bf16.mxu0 0
  %298 = vmatpush1.bf16.msra.mxu0 %v279
  %299 = vmatprep.subr.bf16.mxu0 0
  %300 = vmatpush1.bf16.msra.mxu0 %v280
  %301 = vmatprep.subr.bf16.mxu0 0
  %302 = vmatpush1.bf16.msra.mxu0 %v281
  %303 = vmatprep.subr.bf16.mxu0 0
  %304 = vmatpush1.bf16.msra.mxu0 %v282
  %305 = vmatprep.subr.bf16.mxu0 0
  %306 = vmatpush1.bf16.msra.mxu0 %v283
  %307 = vmatprep.subr.bf16.mxu0 0
  %308 = vmatpush1.bf16.msra.mxu0 %v284
  %309 = vmatprep.subr.bf16.mxu0 0
  %310 = vmatpush1.bf16.msra.mxu0 0
  %311 = vmatprep.subr.bf16.mxu0 0
  %312 = vmatpush1.bf16.msra.mxu0 0
  %313 = vmatprep.subr.bf16.mxu0 0
  %314 = vmatpush1.bf16.msra.mxu0 0
  %315 = vmatprep.subr.bf16.mxu0 0
  %316 = vmatpush1.bf16.msra.mxu0 0
  %317 = vmatprep.subr.bf16.mxu0 0
  %318 = vmatpush1.bf16.msra.mxu0 0
  %319 = vmatprep.subr.bf16.mxu0 0
  %320 = vmatpush1.bf16.msra.mxu0 0
  %321 = vmatprep.subr.bf16.mxu0 0
  %322 = vmatpush1.bf16.msra.mxu0 0
  %323 = vmatprep.subr.bf16.mxu0 0
  %324 = vmatpush1.bf16.msra.mxu0 0
  %325 = vmatprep.mubr.bf16.mxu0 0
  %326 = vmatmul.mubr.bf16.gmra.mrb[0].mxu0 %v214
  %v327 = vpop.f32.mrb[0].mxu0
  %v328 = vadd.f32 %v243, %v327
  %v329 = vpop.f32.mrb[0].mxu0
  %v330 = vpop.f32.mrb[0].mxu0
  %v331 = vadd.f32 %v243, %v330
  %v332 = vpop.f32.mrb[0].mxu0
  %333 = vmatprep.mubr.bf16.mxu0 0
  %334 = vmatmul.mubr.bf16.gmra.mrb[0].mxu0 %v215
  %v335 = vpop.f32.mrb[0].mxu0
  %v336 = vadd.f32 %v243, %v335
  %v337 = vpop.f32.mrb[0].mxu0
  %v338 = vpop.f32.mrb[0].mxu0
  %v339 = vadd.f32 %v243, %v338
  %v340 = vpop.f32.mrb[0].mxu0
  %341 = vmatprep.mubr.bf16.mxu0 0
  %342 = vmatmul.mubr.bf16.gmra.mrb[0].mxu0 %v216
  %v343 = vpop.f32.mrb[0].mxu0
  %v344 = vadd.f32 %v243, %v343
  %v345 = vpop.f32.mrb[0].mxu0
  %v346 = vpop.f32.mrb[0].mxu0
  %v347 = vadd.f32 %v243, %v346
  %v348 = vpop.f32.mrb[0].mxu0
  %349 = vmatprep.mubr.bf16.mxu0 0
  %350 = vmatmul.mubr.bf16.gmra.mrb[0].mxu0 %v217
  %v351 = vpop.f32.mrb[0].mxu0
  %v352 = vadd.f32 %v243, %v351
  %v353 = vpop.f32.mrb[0].mxu0
  %v354 = vpop.f32.mrb[0].mxu0
  %v355 = vadd.f32 %v243, %v354
  %v356 = vpop.f32.mrb[0].mxu0
  %357 = vmatprep.mubr.bf16.mxu0 0
  %358 = vmatmul.mubr.bf16.gmra.mrb[0].mxu0 %v218
  %v359 = vpop.f32.mrb[0].mxu0
  %v360 = vadd.f32 %v243, %v359
  %v361 = vpop.f32.mrb[0].mxu0
  %v362 = vpop.f32.mrb[0].mxu0
  %v363 = vadd.f32 %v243, %v362
  %v364 = vpop.f32.mrb[0].mxu0
  %365 = vmatprep.mubr.bf16.mxu0 0
  %366 = vmatmul.mubr.bf16.gmra.mrb[0].mxu0 %v219
  %v367 = vpop.f32.mrb[0].mxu0
  %v368 = vadd.f32 %v243, %v367
  %v369 = vpop.f32.mrb[0].mxu0
  %v370 = vpop.f32.mrb[0].mxu0
  %v371 = vadd.f32 %v243, %v370
  %v372 = vpop.f32.mrb[0].mxu0
  %373 = vmatprep.mubr.bf16.mxu0 0
  %374 = vmatmul.mubr.bf16.gmra.mrb[0].mxu0 %v220
  %v375 = vpop.f32.mrb[0].mxu0
  %v376 = vadd.f32 %v243, %v375
  %v377 = vpop.f32.mrb[0].mxu0
  %v378 = vpop.f32.mrb[0].mxu0
  %v379 = vadd.f32 %v243, %v378
  %v380 = vpop.f32.mrb[0].mxu0
  %381 = vmatprep.mubr.bf16.mxu0 0
  %382 = vmatmul.mubr.bf16.gmra.mrb[0].mxu0 %v221
  %v383 = vpop.f32.mrb[0].mxu0
  %v384 = vadd.f32 %v243, %v383
  %v385 = vpop.f32.mrb[0].mxu0
  %v386 = vpop.f32.mrb[0].mxu0
  %v387 = vadd.f32 %v243, %v386
  %v388 = vpop.f32.mrb[0].mxu0
  %389 = vdwg.mxu0
  %v390 = vmax.f32 %v328, 0.0
  %v391 = vmax.f32 %v331, 0.0
  %v392 = vmax.f32 %v336, 0.0
  %v393 = vmax.f32 %v339, 0.0
  %v394 = vmax.f32 %v344, 0.0
  %v395 = vmax.f32 %v347, 0.0
  %v396 = vmax.f32 %v352, 0.0
  %v397 = vmax.f32 %v355, 0.0
  %v398 = vmax.f32 %v360, 0.0
  %v399 = vmax.f32 %v363, 0.0
  %v400 = vmax.f32 %v368, 0.0
  %v401 = vmax.f32 %v371, 0.0
  %v402 = vmax.f32 %v376, 0.0
  %v403 = vmax.f32 %v379, 0.0
  %v404 = vmax.f32 %v384, 0.0
  %v405 = vmax.f32 %v387, 0.0
  %v406 = vld [vmem:[%s5] sm:$0x1]
  %v408 = vlaneseq
  %v409 = vshrl.u32 %v408, 7
  %v410 = vsub.s32 0, %v409
  %v411 = vrot.slane %v406, %v410
  %v413 = vmul.f32 %v390, %v411
  %v414 = vmul.f32 %v391, %v411
  %v415 = vmul.f32 %v392, %v411
  %v416 = vmul.f32 %v393, %v411
  %v417 = vmul.f32 %v394, %v411
  %v418 = vmul.f32 %v395, %v411
  %v419 = vmul.f32 %v396, %v411
  %v420 = vmul.f32 %v397, %v411
  %v421 = vmul.f32 %v398, %v411
  %v422 = vmul.f32 %v399, %v411
  %v423 = vmul.f32 %v400, %v411
  %v424 = vmul.f32 %v401, %v411
  %v425 = vmul.f32 %v402, %v411
  %v426 = vmul.f32 %v403, %v411
  %v427 = vmul.f32 %v404, %v411
  %v428 = vmul.f32 %v405, %v411
  %vm429 = vcmask 523264
  %v430 = vsel %vm429, %v413, 0.0
  %431 = vadd.xlane.f32.xlu0 %v430
  %v432 = vpop.xlane.xlu0 %431
  %v433 = vsel %vm429, %v414, 0.0
  %434 = vadd.xlane.f32.xlu0 %v433
  %v435 = vpop.xlane.xlu0 %434
  %v436 = vsel %vm429, %v415, 0.0
  %437 = vadd.xlane.f32.xlu0 %v436
  %v438 = vpop.xlane.xlu0 %437
  %v439 = vsel %vm429, %v416, 0.0
  %440 = vadd.xlane.f32.xlu0 %v439
  %v441 = vpop.xlane.xlu0 %440
  %v442 = vsel %vm429, %v417, 0.0
  %443 = vadd.xlane.f32.xlu0 %v442
  %v444 = vpop.xlane.xlu0 %443
  %v445 = vsel %vm429, %v418, 0.0
  %446 = vadd.xlane.f32.xlu0 %v445
  %v447 = vpop.xlane.xlu0 %446
  %v448 = vsel %vm429, %v419, 0.0
  %449 = vadd.xlane.f32.xlu0 %v448
  %v450 = vpop.xlane.xlu0 %449
  %v451 = vsel %vm429, %v420, 0.0
  %452 = vadd.xlane.f32.xlu0 %v451
  %v453 = vpop.xlane.xlu0 %452
  %v454 = vsel %vm429, %v421, 0.0
  %455 = vadd.xlane.f32.xlu0 %v454
  %v456 = vpop.xlane.xlu0 %455
  %v457 = vsel %vm429, %v422, 0.0
  %458 = vadd.xlane.f32.xlu0 %v457
  %v459 = vpop.xlane.xlu0 %458
  %v460 = vsel %vm429, %v423, 0.0
  %461 = vadd.xlane.f32.xlu0 %v460
  %v462 = vpop.xlane.xlu0 %461
  %v463 = vsel %vm429, %v424, 0.0
  %464 = vadd.xlane.f32.xlu0 %v463
  %v465 = vpop.xlane.xlu0 %464
  %v466 = vsel %vm429, %v425, 0.0
  %467 = vadd.xlane.f32.xlu0 %v466
  %v468 = vpop.xlane.xlu0 %467
  %v469 = vsel %vm429, %v426, 0.0
  %470 = vadd.xlane.f32.xlu0 %v469
  %v471 = vpop.xlane.xlu0 %470
  %v472 = vsel %vm429, %v427, 0.0
  %473 = vadd.xlane.f32.xlu0 %v472
  %v474 = vpop.xlane.xlu0 %473
  %v475 = vsel %vm429, %v428, 0.0
  %476 = vadd.xlane.f32.xlu0 %v475
  %v477 = vpop.xlane.xlu0 %476
  %478 = vxpose.xlu0.b32.start [1/16] %v432, 128
  %479 = vxpose.xlu0.b32.cont [2/16] %v435, 128
  %480 = vxpose.xlu0.b32.cont [3/16] %v438, 128
  %481 = vxpose.xlu0.b32.cont [4/16] %v441, 128
  %482 = vxpose.xlu0.b32.cont [5/16] %v444, 128
  %483 = vxpose.xlu0.b32.cont [6/16] %v447, 128
  %484 = vxpose.xlu0.b32.cont [7/16] %v450, 128
  %485 = vxpose.xlu0.b32.cont [8/16] %v453, 128
  %486 = vxpose.xlu0.b32.cont [9/16] %v456, 128
  %487 = vxpose.xlu0.b32.cont [10/16] %v459, 128
  %488 = vxpose.xlu0.b32.cont [11/16] %v462, 128
  %489 = vxpose.xlu0.b32.cont [12/16] %v465, 128
  %490 = vxpose.xlu0.b32.cont [13/16] %v468, 128
  %491 = vxpose.xlu0.b32.cont [14/16] %v471, 128
  %492 = vxpose.xlu0.b32.cont [15/16] %v474, 128
  %493 = vxpose.xlu0.b32.end [16/16] %v477, 128
  %v494 = vpop.trf.xlu0
  %v495 = vpop.trf.xlu0
  %v496 = vpop.trf.xlu0
  %v497 = vpop.trf.xlu0
  %v498 = vpop.trf.xlu0
  %v499 = vpop.trf.xlu0
  %v500 = vpop.trf.xlu0
  %v501 = vpop.trf.xlu0
  %v502 = vpop.trf.xlu0
  %v503 = vpop.trf.xlu0
  %v504 = vpop.trf.xlu0
  %v505 = vpop.trf.xlu0
  %v506 = vpop.trf.xlu0
  %v507 = vpop.trf.xlu0
  %v508 = vpop.trf.xlu0
  %v509 = vpop.trf.xlu0
  %v510 = vld [vmem:[#allocation2] sm:$0x1]
  %512 = vset.pattern.permute.xlu0 0
  %513 = vperm.xlu0 %512, %v510
  %v514 = vpop.permute.xlu0 %513
  %v516 = vlaneseq
  %v517 = vshrl.u32 %v516, 7
  %v518 = vsub.s32 0, %v517
  %v519 = vrot.slane %v514, %v518
  %v520 = vadd.f32 %v494, %v519
  %v521 = vxor.u32 %v520, 2147483648
  %v522 = vmul.f32 %v521, 1.442695
  %v523 = vpow.pop %v522
  %v524 = vadd.f32 %v523, 1.0
  %v525 = vrcp.pop %v524
  %v526 = vmul.f32 1.0, %v525
  %527 = vst [vmem:[%s7] sm:$0x1] %v526
  // Predicated region
  $region30: #{qsar_model_forward.1} parent=0 // pred_check
    _
  $region31: #{qsar_model_forward.1} parent=0 // pred_check_branch
    %529 = sbr.rel (0) target = $region33
  $region32: #{qsar_model_forward.1} parent=0 // pred_region
    _
  $region33: #{qsar_model_forward.1} parent=0 // pred_fallthru
    _
  // Predicated region
  $region34: #{qsar_model_forward.1} parent=0 // pred_check
    _
  $region35: #{qsar_model_forward.1} parent=0 // pred_check_branch
    %531 = sbr.rel (0) target = $region37
  $region36: #{qsar_model_forward.1} parent=0 // pred_region
    _
  $region37: #{qsar_model_forward.1} parent=0 // pred_fallthru
    _

</llo_original>
